<compile_context>
chip_gen: v7x
topology: tpu7x:2x2x1
jax: 0.10.0
libtpu: 0.0.40
codegen_flags: <defaults>
</compile_context>

<pallas_src>
import functools

import jax
import jax.numpy as jnp
from jax.experimental import pallas as pl
from jax.experimental.pallas import tpu as pltpu


def _round_up(x, m):
    return (x + m - 1) // m * m


def _adapter_kernel(idx_ref, x_ref, wd_ref, bd_ref, wu_ref, bu_ref, o_ref):
    """Fused down-proj -> ReLU -> up-proj on one (TN, dim_p) row tile."""
    del idx_ref  # routing is consumed by the BlockSpec index_map only
    x = x_ref[...]                                              # (TN, dim_p)
    # down projection: x @ Wd^T (weights pre-transposed; no in-kernel .T)
    h = jnp.dot(x, wd_ref[...], preferred_element_type=jnp.float32)
    h = jnp.maximum(h + bd_ref[...].astype(jnp.float32), 0.0)   # (TN, ad_p) f32
    # up projection: h @ Wu^T (cast back to the activation dtype so bf16
    # inputs stay on the native bf16 MXU path; accumulate in f32)
    y = jnp.dot(h.astype(wu_ref.dtype), wu_ref[...],
                preferred_element_type=jnp.float32)
    y = y + bu_ref[...].astype(jnp.float32)
    o_ref[...] = y.astype(o_ref.dtype)


@functools.lru_cache(maxsize=None)
def _vmem_limit_bytes():
    """Per-generation VMEM limit: ~110 MiB on 128 MiB parts, ~52 MiB on v7x."""
    try:
        cap = int(pltpu.get_tpu_info().vmem_capacity_bytes)
    except Exception:
        cap = 64 * 1024 * 1024  # v7x-safe fallback
    return max(min(cap - 12 * 1024 * 1024, 110 * 1024 * 1024), 32 * 1024 * 1024)


def _choose_tile_rows(n, dim_p, itemsize, vmem_limit, weight_bytes, row_align):
    # x/y budget = vmem limit minus double-buffered weights/biases and margin.
    budget = max(vmem_limit - 2 * weight_bytes - 4 * 1024 * 1024,
                 4 * 1024 * 1024)
    tn_budget = budget // (4 * dim_p * itemsize)        # 2 tensors x 2 buffers
    # ~8 MiB of x per tile is plenty to amortize the ~0.35 us/step overhead.
    tn_bytes = (8 * 1024 * 1024) // (dim_p * itemsize)
    # Keep >= ~8 grid steps (megacore split + pipeline prefetch depth).
    tn_steps = pl.cdiv(n, 8)
    tn = min(tn_budget, tn_bytes, tn_steps)
    tn = max(row_align, (tn // row_align) * row_align)   # packed-sublane align
    return int(tn)


@jax.jit
def _adapter_forward(idx, x2d, wd_stack, bd_stack, wu_t, bu):
    """idx: (1,) int32; x2d: (N, dim); wd_stack: (K, dim, adapter_dim);
       bd_stack: (K, 1, adapter_dim); wu_t: (adapter_dim, dim); bu: (1, dim)."""
    n, dim = x2d.shape
    adapter_dim = wd_stack.shape[2]
    dtype = x2d.dtype
    itemsize = jnp.dtype(dtype).itemsize

    # Keep weights/biases in the activation dtype (bf16 MXU path, halved DMA).
    wd_stack = wd_stack.astype(dtype)
    bd_stack = bd_stack.astype(dtype)
    wu_t = wu_t.astype(dtype)
    bu = bu.astype(dtype)

    # Feature / adapter padding only when the dims are not already 128-aligned
    # (weight pads are cheap; x is only padded/sliced in the unaligned case).
    dim_p = max(_round_up(dim, 128), 128)
    ad_p = max(_round_up(adapter_dim, 128), 128)
    if dim_p != dim:
        x2d = jnp.pad(x2d, ((0, 0), (0, dim_p - dim)))
        wd_stack = jnp.pad(wd_stack, ((0, 0), (0, dim_p - dim), (0, 0)))
        wu_t = jnp.pad(wu_t, ((0, 0), (0, dim_p - dim)))
        bu = jnp.pad(bu, ((0, 0), (0, dim_p - dim)))
    if ad_p != adapter_dim:
        wd_stack = jnp.pad(wd_stack, ((0, 0), (0, 0), (0, ad_p - adapter_dim)))
        bd_stack = jnp.pad(bd_stack, ((0, 0), (0, 0), (0, ad_p - adapter_dim)))
        wu_t = jnp.pad(wu_t, ((0, ad_p - adapter_dim), (0, 0)))

    # Row tiling (no row padding: ragged last block handled by Pallas).
    row_align = 8 * max(1, 4 // itemsize)   # 8 f32, 16 bf16, 32 int8/fp8
    vmem_limit = _vmem_limit_bytes()
    weight_bytes = (dim_p * ad_p + ad_p + ad_p * dim_p + dim_p) * itemsize
    tn = _choose_tile_rows(n, dim_p, itemsize, vmem_limit, weight_bytes,
                           row_align)
    grid = (pl.cdiv(n, tn),)

    flops = 4 * n * dim_p * ad_p
    bytes_accessed = 2 * n * dim_p * itemsize + weight_bytes

    out = pl.pallas_call(
        _adapter_kernel,
        out_shape=jax.ShapeDtypeStruct((n, dim_p), dtype),
        grid_spec=pltpu.PrefetchScalarGridSpec(
            num_scalar_prefetch=1,
            grid=grid,
            in_specs=[
                # x row tile (software-pipelined / double-buffered)
                pl.BlockSpec((tn, dim_p), lambda i, idx: (i, 0)),
                # W_down^T: stacked (K, dim_p, ad_p); scalar-prefetch routing
                pl.BlockSpec((None, dim_p, ad_p),
                             lambda i, idx: (idx[0], 0, 0)),
                # b_down: stacked (K, 1, ad_p)
                pl.BlockSpec((None, 1, ad_p),
                             lambda i, idx: (idx[0], 0, 0)),
                # W_up^T: (ad_p, dim_p), grid-invariant
                pl.BlockSpec((ad_p, dim_p), lambda i, idx: (0, 0)),
                # b_up: (1, dim_p), grid-invariant
                pl.BlockSpec((1, dim_p), lambda i, idx: (0, 0)),
            ],
            out_specs=pl.BlockSpec((tn, dim_p), lambda i, idx: (i, 0)),
        ),
        compiler_params=pltpu.CompilerParams(
            dimension_semantics=("parallel",),
            vmem_limit_bytes=vmem_limit,
        ),
        cost_estimate=pl.CostEstimate(
            flops=flops, transcendentals=0, bytes_accessed=bytes_accessed),
    )(idx, x2d, wd_stack, bd_stack, wu_t, bu)

    if dim_p != dim:
        out = out[:, :dim]
    return out


class AdapterLayersPallas:
    """JAX/Pallas port of AdapterLayers (Adamix adapter)."""

    def __init__(self, dim, adapter_dim=1, *, key):
        self.dim = dim
        self.adapter_dim = adapter_dim
        ks = jax.random.split(key, 6)

        def linear_init(wkey, bkey, out_f, in_f):
            # PyTorch nn.Linear default: U(-1/sqrt(in_f), 1/sqrt(in_f)).
            bound = 1.0 / float(in_f) ** 0.5
            # Stored pre-transposed: (in_f, out_f) so the kernel does x @ W^T
            # without an in-kernel transpose.
            w_t = jax.random.uniform(wkey, (in_f, out_f), jnp.float32,
                                     minval=-bound, maxval=bound)
            b = jax.random.uniform(bkey, (1, out_f), jnp.float32,
                                   minval=-bound, maxval=bound)
            return w_t, b

        # two down layers (dim -> adapter_dim), stored stacked for prefetch
        # routing: (2, dim, adapter_dim) / (2, 1, adapter_dim).
        w0_t, b0 = linear_init(ks[0], ks[1], adapter_dim, dim)
        w1_t, b1 = linear_init(ks[2], ks[3], adapter_dim, dim)
        self.down_w_t = jnp.stack([w0_t, w1_t])
        self.down_b = jnp.stack([b0, b1])
        # up layer: adapter_dim -> dim
        self.up_w_t, self.up_b = linear_init(ks[4], ks[5], dim, adapter_dim)

    def __call__(self, x, test=False, *, route_key=None):
        orig_shape = x.shape
        x2d = x.reshape(-1, self.dim)

        if not test:
            if route_key is None:
                # TODO(synk): torch.randint(..., size=(1,)).item() per forward
                # has no host-sync-free equivalent; require explicit randomness.
                raise ValueError(
                    "train mode (test=False) requires route_key for the "
                    "random down-layer selection")
            idx = jax.random.randint(route_key, (1,), 0, 2, dtype=jnp.int32)
            wd_stack, bd_stack = self.down_w_t, self.down_b
        else:
            # test_down = 0.5 * down0 + 0.5 * down1 (tiny plain-JAX glue).
            wd_stack = (0.5 * (self.down_w_t[0] + self.down_w_t[1]))[None]
            bd_stack = (0.5 * (self.down_b[0] + self.down_b[1]))[None]
            idx = jnp.zeros((1,), jnp.int32)

        y2d = _adapter_forward(idx, x2d, wd_stack, bd_stack,
                               self.up_w_t, self.up_b)
        return y2d.reshape(orig_shape)


def _reference(x2d, wd_t, bd, wu_t, bu):
    h = jnp.maximum(x2d @ wd_t + bd, 0.0)
    return h @ wu_t + bu


if __name__ == "__main__":
    key = jax.random.PRNGKey(0)
    k_param, k_x, k_route = jax.random.split(key, 3)

    # n = 2*9 = 18 rows: deliberately NOT a multiple of the 8-row tile, so the
    # ragged last grid block (masked edge handling) is exercised.
    B, S, dim, adapter_dim = 2, 9, 32, 4
    model = AdapterLayersPallas(dim, adapter_dim, key=k_param)

    x = jax.random.normal(k_x, (B, S, dim), jnp.float32)

    # train-mode path (scalar-prefetch routed down layer, explicit key)
    y_train = jax.block_until_ready(model(x, test=False, route_key=k_route))
    # test-mode path (0.5-averaged down weights)
    y_test = jax.block_until_ready(model(x, test=True))

    # correctness vs pure-JAX reference (host int() only here, in the harness)
    idx = int(jax.random.randint(k_route, (1,), 0, 2, dtype=jnp.int32)[0])
    wd_t = model.down_w_t[idx]
    bd = model.down_b[idx]
    x2d = x.reshape(-1, dim)
    ref_train = _reference(x2d, wd_t, bd, model.up_w_t,
                           model.up_b).reshape(B, S, dim)
    wd_avg = 0.5 * (model.down_w_t[0] + model.down_w_t[1])
    bd_avg = 0.5 * (model.down_b[0] + model.down_b[1])
    ref_test = _reference(x2d, wd_avg, bd_avg, model.up_w_t,
                          model.up_b).reshape(B, S, dim)

    assert jnp.allclose(y_train, ref_train, atol=1e-5, rtol=1e-5), \
        float(jnp.max(jnp.abs(y_train - ref_train)))
    assert jnp.allclose(y_test, ref_test, atol=1e-5, rtol=1e-5), \
        float(jnp.max(jnp.abs(y_test - ref_test)))

    # bf16 activation path: weights are cast in-wrapper, 16-row sublane tiles.
    xb = x.astype(jnp.bfloat16)
    yb = jax.block_until_ready(model(xb, test=True))
    assert yb.dtype == jnp.bfloat16
    assert jnp.allclose(yb.astype(jnp.float32), ref_test,
                        atol=5e-2, rtol=5e-2), \
        float(jnp.max(jnp.abs(yb.astype(jnp.float32) - ref_test)))

    print("KERNEL_OK")
</pallas_src>

<mosaic_0001>
module attributes {stable_mosaic.version = 11 : i64} {
  func.func @_adapter_kernel(%arg0: i32, %arg1: memref<1xi32, #tpu.memory_space<smem>>, %arg2: memref<8x128xf32, #tpu.memory_space<vmem>>, %arg3: memref<1x128x128xf32, #tpu.memory_space<vmem>>, %arg4: memref<1x1x128xf32, #tpu.memory_space<vmem>>, %arg5: memref<128x128xf32, #tpu.memory_space<vmem>>, %arg6: memref<1x128xf32, #tpu.memory_space<vmem>>, %arg7: memref<8x128xf32, #tpu.memory_space<vmem>>) attributes {dimension_semantics = [#tpu.dimension_semantics<parallel>], iteration_bounds = array<i64: 3>, scalar_prefetch = 1 : i64, scratch_operands = 0 : i64, tpu.core_type = #tpu.core_type<tc>, window_params = [{transform_indices = @transform_0, window_bounds = array<i64: 8, 128>}, {transform_indices = @transform_1, window_bounds = array<i64: 1, 128, 128>}, {transform_indices = @transform_2, window_bounds = array<i64: 1, 1, 128>}, {pipeline_mode = #tpu.pipeline_mode<synchronous>, transform_indices = @transform_3, window_bounds = array<i64: 128, 128>}, {pipeline_mode = #tpu.pipeline_mode<synchronous>, transform_indices = @transform_4, window_bounds = array<i64: 1, 128>}, {transform_indices = @transform_5, window_bounds = array<i64: 8, 128>}]} {
    %c0 = arith.constant 0 : index
    %c0_0 = arith.constant 0 : index
    %0 = vector.load %arg2[%c0, %c0_0] : memref<8x128xf32, #tpu.memory_space<vmem>>, vector<8x128xf32>
    %c0_1 = arith.constant 0 : index
    %c0_2 = arith.constant 0 : index
    %c0_3 = arith.constant 0 : index
    %1 = vector.load %arg3[%c0_1, %c0_2, %c0_3] : memref<1x128x128xf32, #tpu.memory_space<vmem>>, vector<1x128x128xf32>
    %2 = vector.shape_cast %1 : vector<1x128x128xf32> to vector<128x128xf32>
    %cst = arith.constant dense<0.000000e+00> : vector<8x128xf32>
    %3 = tpu.matmul %0, %2, %cst {dimension_numbers = #tpu.dot_dimension_numbers<[1], [0], [0], [1], [0, 0, 1, 1], [], []>} : vector<8x128xf32>, vector<128x128xf32>, vector<8x128xf32> -> vector<8x128xf32>
    %c0_4 = arith.constant 0 : index
    %c0_5 = arith.constant 0 : index
    %c0_6 = arith.constant 0 : index
    %4 = vector.load %arg4[%c0_4, %c0_5, %c0_6] : memref<1x1x128xf32, #tpu.memory_space<vmem>>, vector<1x1x128xf32>
    %5 = vector.shape_cast %4 : vector<1x1x128xf32> to vector<1x128xf32>
    %6 = vector.broadcast %5 : vector<1x128xf32> to vector<8x128xf32>
    %7 = arith.addf %3, %6 : vector<8x128xf32>
    %cst_7 = arith.constant 0.000000e+00 : f32
    %8 = vector.broadcast %cst_7 : f32 to vector<8x128xf32>
    %9 = arith.maximumf %7, %8 : vector<8x128xf32>
    %c0_8 = arith.constant 0 : index
    %c0_9 = arith.constant 0 : index
    %10 = vector.load %arg5[%c0_8, %c0_9] : memref<128x128xf32, #tpu.memory_space<vmem>>, vector<128x128xf32>
    %cst_10 = arith.constant dense<0.000000e+00> : vector<8x128xf32>
    %11 = tpu.matmul %9, %10, %cst_10 {dimension_numbers = #tpu.dot_dimension_numbers<[1], [0], [0], [1], [0, 0, 1, 1], [], []>} : vector<8x128xf32>, vector<128x128xf32>, vector<8x128xf32> -> vector<8x128xf32>
    %c0_11 = arith.constant 0 : index
    %c0_12 = arith.constant 0 : index
    %12 = vector.load %arg6[%c0_11, %c0_12] : memref<1x128xf32, #tpu.memory_space<vmem>>, vector<1x128xf32>
    %13 = vector.broadcast %12 : vector<1x128xf32> to vector<8x128xf32>
    %14 = arith.addf %11, %13 : vector<8x128xf32>
    %c0_13 = arith.constant 0 : index
    %c0_14 = arith.constant 0 : index
    %15 = vector.load %arg7[%c0_13, %c0_14] : memref<8x128xf32, #tpu.memory_space<vmem>>, vector<8x128xf32>
    tpu.vector_store %arg7[%c0_13, %c0_14], %14 {strides = array<i32>} : memref<8x128xf32, #tpu.memory_space<vmem>>, vector<8x128xf32>,
    return
  }
  func.func @transform_0(%arg0: i32, %arg1: memref<1xi32, #tpu.memory_space<smem>>) -> (i32, i32) {
    %c0_i32 = arith.constant 0 : i32
    %c0_i32_0 = arith.constant 0 : i32
    return %arg0, %c0_i32 : i32, i32
  }
  func.func @transform_1(%arg0: i32, %arg1: memref<1xi32, #tpu.memory_space<smem>>) -> (i32, i32, i32) {
    %c0 = arith.constant 0 : index
    %0 = memref.load %arg1[%c0] : memref<1xi32, #tpu.memory_space<smem>>
    %c0_i32 = arith.constant 0 : i32
    %c0_i32_0 = arith.constant 0 : i32
    %c0_i32_1 = arith.constant 0 : i32
    return %0, %c0_i32, %c0_i32_0 : i32, i32, i32
  }
  func.func @transform_2(%arg0: i32, %arg1: memref<1xi32, #tpu.memory_space<smem>>) -> (i32, i32, i32) {
    %c0 = arith.constant 0 : index
    %0 = memref.load %arg1[%c0] : memref<1xi32, #tpu.memory_space<smem>>
    %c0_i32 = arith.constant 0 : i32
    %c0_i32_0 = arith.constant 0 : i32
    %c0_i32_1 = arith.constant 0 : i32
    return %0, %c0_i32, %c0_i32_0 : i32, i32, i32
  }
  func.func @transform_3(%arg0: i32, %arg1: memref<1xi32, #tpu.memory_space<smem>>) -> (i32, i32) {
    %c0_i32 = arith.constant 0 : i32
    %c0_i32_0 = arith.constant 0 : i32
    %c0_i32_1 = arith.constant 0 : i32
    return %c0_i32, %c0_i32_0 : i32, i32
  }
  func.func @transform_4(%arg0: i32, %arg1: memref<1xi32, #tpu.memory_space<smem>>) -> (i32, i32) {
    %c0_i32 = arith.constant 0 : i32
    %c0_i32_0 = arith.constant 0 : i32
    %c0_i32_1 = arith.constant 0 : i32
    return %c0_i32, %c0_i32_0 : i32, i32
  }
  func.func @transform_5(%arg0: i32, %arg1: memref<1xi32, #tpu.memory_space<smem>>) -> (i32, i32) {
    %c0_i32 = arith.constant 0 : i32
    %c0_i32_0 = arith.constant 0 : i32
    return %arg0, %c0_i32 : i32, i32
  }
}

</mosaic_0001>

<llo_original>
// kernel: _adapter_forward.1
$region0: #{_adapter_forward.1}
  #allocation0 [shape = 'u32[]', space=smem, size = 0x4, offset = 0x4, fixed_abs, tag = 'smem constant byte address 0x4 - core index']
  #allocation1 [shape = 'u32[144,128]{1,0:T(1,128)}', space=vmem, size = 0x12000, scoped, tag = 'internal scratch']
  #allocation2 [shape = 's32[1]{0}', space=sflag, size = 0x4, scoped, tag = 'scoped memory for _adapter_forward.1']
  #allocation3 [shape = 's32[1]{0:T(128)S(6)}', space=smem, size = 0x200, scoped, tag = 'prefetched SMEM operand 0']
  %s0 = inlined_call_operand.<no memory space> [shape: s32[1], index: 0, kind: input, shape index: {}]
  %s1 = inlined_call_operand.vmem [shape: f32[18,128], index: 1, kind: input, shape index: {}]
  %s2 = inlined_call_operand.vmem [shape: f32[2,128,128], index: 2, kind: input, shape index: {}]
  %s3 = inlined_call_operand.vmem [shape: f32[2,1,128], index: 3, kind: input, shape index: {}]
  %s4 = inlined_call_operand.vmem [shape: f32[128,128], index: 4, kind: input, shape index: {}]
  %s5 = inlined_call_operand.vmem [shape: f32[1,128], index: 5, kind: input, shape index: {}]
  %s6 = inlined_call_operand.hbm [shape: f32[18,128], index: 6, kind: output, shape index: {}]
  %s7 = sld [smem:[#allocation0]]
  $region53: #{_adapter_forward.1} parent=0
    _
  %s9 = ssub.s32 1, %s7
  %s10 = scalar_select 0, %s9, %s7
  %11 = sst [smem:[#allocation3]] %s0
  $region1: #{_adapter_forward.1} parent=0
    #allocation4 [shape = 'u8[8192]{0}', space=vmem, size = 0x2000, scoped, tag = 'output window, operand 0']
    #allocation5 [shape = 's32[2]{0}', space=sflag, size = 0x8, scoped, tag = 'scoped memory for _adapter_forward.1']
    %12 = vsyncpa [#allocation5], 0
    %s13 = scalar_lea.sflag [#allocation5], 1
    %14 = vsyncpa %s13, 0
    loop: start=0, step=1, limit=5
    $region2: #{_adapter_forward.1} parent=1 // loop_pre_header
      _
    $region3: #{_adapter_forward.1} parent=1 // loop_header
      %s16 = sphi 0, %s20
      %p17 = scmp.ge.s32.totalorder %s16, 5
      %s26 = sphi 0, %s28
      %s29 = sphi 0, %s26
      %s30 = sphi 0, %s29
      %s46 = sphi 0, %s30
      %s54 = sphi 0, %s56
      %s57 = sphi 0, %s54
      %s58 = sphi 0, %s57
      %s74 = sphi 0, %s58
      %s82 = sphi 0, %s84
      %s85 = sphi 0, %s82
      %s86 = sphi 0, %s85
      %s102 = sphi 0, %s86
      %s106 = sphi 0, %s106
      %s108 = sphi 0, %s106
      %s109 = sphi 0, %s108
      %s123 = sphi 0, %s109
      %s127 = sphi 0, %s127
      %s129 = sphi 0, %s127
      %s130 = sphi 0, %s129
      %s144 = sphi 0, %s130
      %s150 = sphi 0, %s152
      %s153 = sphi 0, %s150
      %s154 = sphi 0, %s153
      %s170 = sphi 0, %s154
    $region4: #{_adapter_forward.1} parent=1 // loop_header_branch
      %19 = sbr.rel (%p17) target = $region8
    $region5: #{_adapter_forward.1} parent=1 // loop_body
      %s21 = ssub.s32 %s16, 1
      %s22 = ssub.s32 %s16, 2
      %s23 = sadd.s32 %s16, 1
      %s24 = ssub.s32 %s16, %s23
      %p25 = scmp.eq.s32.totalorder %s24, 0
      %s27 = sadd.s32 %s26, 1
      %s28 = scalar_select %p25, %s26, %s27
      %p31 = pneg %p25
      %p32 = scmp.eq.s32.totalorder %s16, 2
      %p33 = por %p31, %p32
      %p34 = scmp.ne.s32.totalorder %s26, %s29
      %p35 = scmp.eq.s32.totalorder %s16, 0
      %p36 = por %p34, %p35
      %p37 = scmp.ne.s32.totalorder %s26, %s29
      %p38 = scmp.eq.s32.totalorder %s21, 2
      %p39 = por %p37, %p38
      %p40 = scmp.ne.s32.totalorder %s29, %s30
      %p41 = scmp.eq.s32.totalorder %s21, 0
      %p42 = por %p40, %p41
      %p43 = scmp.ne.s32.totalorder %s29, %s30
      %p44 = scmp.eq.s32.totalorder %s22, 2
      %p45 = por %p43, %p44
      %p47 = scmp.ne.s32.totalorder %s30, %s46
      %p48 = scmp.eq.s32.totalorder %s22, 0
      %p49 = por %p47, %p48
      %s50 = sld [smem:[#allocation3]]
      %s51 = sld [smem:[#allocation3]]
      %s52 = ssub.s32 %s50, %s51
      %p53 = scmp.eq.s32.totalorder %s52, 0
      %s55 = sadd.s32 %s54, 1
      %s56 = scalar_select %p53, %s54, %s55
      %p59 = pneg %p53
      %p60 = scmp.eq.s32.totalorder %s16, 2
      %p61 = por %p59, %p60
      %p62 = scmp.ne.s32.totalorder %s54, %s57
      %p63 = scmp.eq.s32.totalorder %s16, 0
      %p64 = por %p62, %p63
      %p65 = scmp.ne.s32.totalorder %s54, %s57
      %p66 = scmp.eq.s32.totalorder %s21, 2
      %p67 = por %p65, %p66
      %p68 = scmp.ne.s32.totalorder %s57, %s58
      %p69 = scmp.eq.s32.totalorder %s21, 0
      %p70 = por %p68, %p69
      %p71 = scmp.ne.s32.totalorder %s57, %s58
      %p72 = scmp.eq.s32.totalorder %s22, 2
      %p73 = por %p71, %p72
      %p75 = scmp.ne.s32.totalorder %s58, %s74
      %p76 = scmp.eq.s32.totalorder %s22, 0
      %p77 = por %p75, %p76
      %s78 = sld [smem:[#allocation3]]
      %s79 = sld [smem:[#allocation3]]
      %s80 = ssub.s32 %s78, %s79
      %p81 = scmp.eq.s32.totalorder %s80, 0
      %s83 = sadd.s32 %s82, 1
      %s84 = scalar_select %p81, %s82, %s83
      %p87 = pneg %p81
      %p88 = scmp.eq.s32.totalorder %s16, 2
      %p89 = por %p87, %p88
      %p90 = scmp.ne.s32.totalorder %s82, %s85
      %p91 = scmp.eq.s32.totalorder %s16, 0
      %p92 = por %p90, %p91
      %p93 = scmp.ne.s32.totalorder %s82, %s85
      %p94 = scmp.eq.s32.totalorder %s21, 2
      %p95 = por %p93, %p94
      %p96 = scmp.ne.s32.totalorder %s85, %s86
      %p97 = scmp.eq.s32.totalorder %s21, 0
      %p98 = por %p96, %p97
      %p99 = scmp.ne.s32.totalorder %s85, %s86
      %p100 = scmp.eq.s32.totalorder %s22, 2
      %p101 = por %p99, %p100
      %p103 = scmp.ne.s32.totalorder %s86, %s102
      %p104 = scmp.eq.s32.totalorder %s22, 0
      %p105 = por %p103, %p104
      %s107 = sadd.s32 %s106, 1
      %p110 = scmp.eq.s32.totalorder %s16, 2
      %p111 = scmp.ne.s32.totalorder %s106, %s108
      %p112 = scmp.eq.s32.totalorder %s16, 0
      %p113 = por %p111, %p112
      %p114 = scmp.ne.s32.totalorder %s106, %s108
      %p115 = scmp.eq.s32.totalorder %s21, 2
      %p116 = por %p114, %p115
      %p117 = scmp.ne.s32.totalorder %s108, %s109
      %p118 = scmp.eq.s32.totalorder %s21, 0
      %p119 = por %p117, %p118
      %p120 = scmp.ne.s32.totalorder %s108, %s109
      %p121 = scmp.eq.s32.totalorder %s22, 2
      %p122 = por %p120, %p121
      %p124 = scmp.ne.s32.totalorder %s109, %s123
      %p125 = scmp.eq.s32.totalorder %s22, 0
      %p126 = por %p124, %p125
      %s128 = sadd.s32 %s127, 1
      %p131 = scmp.eq.s32.totalorder %s16, 2
      %p132 = scmp.ne.s32.totalorder %s127, %s129
      %p133 = scmp.eq.s32.totalorder %s16, 0
      %p134 = por %p132, %p133
      %p135 = scmp.ne.s32.totalorder %s127, %s129
      %p136 = scmp.eq.s32.totalorder %s21, 2
      %p137 = por %p135, %p136
      %p138 = scmp.ne.s32.totalorder %s129, %s130
      %p139 = scmp.eq.s32.totalorder %s21, 0
      %p140 = por %p138, %p139
      %p141 = scmp.ne.s32.totalorder %s129, %s130
      %p142 = scmp.eq.s32.totalorder %s22, 2
      %p143 = por %p141, %p142
      %p145 = scmp.ne.s32.totalorder %s130, %s144
      %p146 = scmp.eq.s32.totalorder %s22, 0
      %p147 = por %p145, %p146
      %s148 = ssub.s32 %s16, %s23
      %p149 = scmp.eq.s32.totalorder %s148, 0
      %s151 = sadd.s32 %s150, 1
      %s152 = scalar_select %p149, %s150, %s151
      %p155 = pneg %p149
      %p156 = scmp.eq.s32.totalorder %s16, 2
      %p157 = por %p155, %p156
      %p158 = scmp.ne.s32.totalorder %s150, %s153
      %p159 = scmp.eq.s32.totalorder %s16, 0
      %p160 = por %p158, %p159
      %p161 = scmp.ne.s32.totalorder %s150, %s153
      %p162 = scmp.eq.s32.totalorder %s21, 2
      %p163 = por %p161, %p162
      %p164 = scmp.ne.s32.totalorder %s153, %s154
      %p165 = scmp.eq.s32.totalorder %s21, 0
      %p166 = por %p164, %p165
      %p167 = scmp.ne.s32.totalorder %s153, %s154
      %p168 = scmp.eq.s32.totalorder %s22, 2
      %p169 = por %p167, %p168
      %p171 = scmp.ne.s32.totalorder %s154, %s170
      %p172 = scmp.eq.s32.totalorder %s22, 0
      %p173 = por %p171, %p172
      %p174 = scmp.le.s32.totalorder 1, %s16
      %p175 = scmp.lt.s32.totalorder %s16, 4
      %p176 = pnand %p174, %p175
      %p177 = pneg %p176
      // Predicated region
      $region9: #{_adapter_forward.1} parent=5 // pred_check
        _
      $region10: #{_adapter_forward.1} parent=5 // pred_check_branch
        %179 = sbr.rel (%p176) target = $region12
      $region11: #{_adapter_forward.1} parent=5 // pred_region
        %s180 = ssub.s32 %s16, 1
        // Predicated region
        $region13: #{_adapter_forward.1} parent=11 // pred_check
          %p181 = pneg %p70
        $region14: #{_adapter_forward.1} parent=11 // pred_check_branch
          %183 = sbr.rel (%p181) target = $region16
        $region15: #{_adapter_forward.1} parent=11 // pred_region
          %s184 = sld [smem:[#allocation3]]
          %p185 = scmp.lt.s32.totalorder %s184, 1
          %s186 = scalar_select %p185, %s184, 1
          %s187 = smul.addr %s186, 16
          %s188 = smul.addr %s187, 8
          %s189 = scalar_lea.vmem %s2, %s188
          %s190 = sld [smem:[#allocation3]]
        $region16: #{_adapter_forward.1} parent=11 // pred_fallthru
          _
        // Predicated region
        $region17: #{_adapter_forward.1} parent=11 // pred_check
          %p191 = pneg %p98
        $region18: #{_adapter_forward.1} parent=11 // pred_check_branch
          %193 = sbr.rel (%p191) target = $region20
        $region19: #{_adapter_forward.1} parent=11 // pred_region
          %s194 = sld [smem:[#allocation3]]
          %p195 = scmp.lt.s32.totalorder %s194, 1
          %s196 = scalar_select %p195, %s194, 1
          %s197 = scalar_lea.vmem %s3, %s196
          %s198 = sld [smem:[#allocation3]]
        $region20: #{_adapter_forward.1} parent=11 // pred_fallthru
          _
        // Predicated region
        $region21: #{_adapter_forward.1} parent=11 // pred_check
          %p199 = pneg %p119
        $region22: #{_adapter_forward.1} parent=11 // pred_check_branch
          %201 = sbr.rel (%p199) target = $region24
        $region23: #{_adapter_forward.1} parent=11 // pred_region
          _
        $region24: #{_adapter_forward.1} parent=11 // pred_fallthru
          _
        // Predicated region
        $region25: #{_adapter_forward.1} parent=11 // pred_check
          %p202 = pneg %p140
        $region26: #{_adapter_forward.1} parent=11 // pred_check_branch
          %204 = sbr.rel (%p202) target = $region28
        $region27: #{_adapter_forward.1} parent=11 // pred_region
          _
        $region28: #{_adapter_forward.1} parent=11 // pred_fallthru
          _
      $region12: #{_adapter_forward.1} parent=5 // pred_fallthru
        _
      %p205 = scmp.lt.s32.totalorder %s16, 3
      // Predicated region
      $region29: #{_adapter_forward.1} parent=5 // pred_check
        %p206 = pneg %p205
      $region30: #{_adapter_forward.1} parent=5 // pred_check_branch
        %208 = sbr.rel (%p206) target = $region32
      $region31: #{_adapter_forward.1} parent=5 // pred_region
        // Predicated region
        $region33: #{_adapter_forward.1} parent=31 // pred_check
          %p209 = pneg %p36
        $region34: #{_adapter_forward.1} parent=31 // pred_check_branch
          %211 = sbr.rel (%p209) target = $region36
        $region35: #{_adapter_forward.1} parent=31 // pred_region
          %p212 = scmp.lt.s32.totalorder %s16, 2
          %s213 = scalar_select %p212, %s16, 2
          %s214 = smul.addr %s213, 8
          %s215 = scalar_lea.vmem %s1, %s214
        $region36: #{_adapter_forward.1} parent=31 // pred_fallthru
          _
      $region32: #{_adapter_forward.1} parent=5 // pred_fallthru
        _
      %p216 = scmp.le.s32.totalorder 1, %s16
      %p217 = scmp.lt.s32.totalorder %s16, 4
      %p218 = pnand %p216, %p217
      %p219 = pneg %p218
      // Predicated region
      $region37: #{_adapter_forward.1} parent=5 // pred_check
        _
      $region38: #{_adapter_forward.1} parent=5 // pred_check_branch
        %221 = sbr.rel (%p218) target = $region40
      $region39: #{_adapter_forward.1} parent=5 // pred_region
        %s222 = ssub.s32 %s16, 1
        %p223 = scmp.lt.s32.totalorder %s21, 2
        %s224 = scalar_select %p223, %s21, 2
        %s225 = smul.addr %s224, 8
        %s226 = scalar_lea.vmem %s1, %s225
        %p227 = pneg %p42
        %p228 = pneg %p39
        %s229 = sld [smem:[#allocation3]]
        %p230 = scmp.lt.s32.totalorder %s229, 1
        %s231 = scalar_select %p230, %s229, 1
        %s232 = smul.addr %s231, 16
        %s233 = smul.addr %s232, 8
        %s234 = scalar_lea.vmem %s2, %s233
        %p235 = pneg %p70
        %p236 = pneg %p67
        %s237 = sld [smem:[#allocation3]]
        %p238 = scmp.lt.s32.totalorder %s237, 1
        %s239 = scalar_select %p238, %s237, 1
        %s240 = scalar_lea.vmem %s3, %s239
        %p241 = pneg %p98
        %p242 = pneg %p95
        %p243 = pneg %p119
        %p244 = pneg %p116
        %p245 = pneg %p140
        %p246 = pneg %p137
        %p247 = pneg %p166
        %p248 = pneg %p163
        %s249 = sand.u32 %s153, 1
        %s250 = scalar_lea.sflag [#allocation5], %s249
        %s251 = sand.u32 %s153, 1
        %s252 = smul.addr %s251, 8
        %s253 = scalar_lea.vmem [#allocation4], %s252
        %p254 = scmp.lt.s32.totalorder %s21, 2
        %s255 = scalar_select %p254, %s21, 2
        %s256 = smul.addr %s255, 8
        %s257 = scalar_lea.vmem %s1, %s256
        %s258 = sld [smem:[#allocation3]]
        %p259 = scmp.lt.s32.totalorder %s258, 1
        %s260 = scalar_select %p259, %s258, 1
        %s261 = smul.addr %s260, 16
        %s262 = smul.addr %s261, 8
        %s263 = scalar_lea.vmem %s2, %s262
        %s264 = sld [smem:[#allocation3]]
        %s265 = sld [smem:[#allocation3]]
        %p266 = scmp.lt.s32.totalorder %s265, 1
        %s267 = scalar_select %p266, %s265, 1
        %s268 = scalar_lea.vmem %s3, %s267
        %s269 = sld [smem:[#allocation3]]
        %v270 = vld [vmem:[%s257] sm:$0xff]
        %v271 = vld [vmem:[%s263] sm:$0xff]
        %v272 = vld [vmem:[%s263 + $0x8] sm:$0xff]
        %v273 = vld [vmem:[%s263 + $0x10] sm:$0xff]
        %v274 = vld [vmem:[%s263 + $0x18] sm:$0xff]
        %v275 = vld [vmem:[%s263 + $0x20] sm:$0xff]
        %v276 = vld [vmem:[%s263 + $0x28] sm:$0xff]
        %v277 = vld [vmem:[%s263 + $0x30] sm:$0xff]
        %v278 = vld [vmem:[%s263 + $0x38] sm:$0xff]
        %v279 = vld [vmem:[%s263 + $0x40] sm:$0xff]
        %v280 = vld [vmem:[%s263 + $0x48] sm:$0xff]
        %v281 = vld [vmem:[%s263 + $0x50] sm:$0xff]
        %v282 = vld [vmem:[%s263 + $0x58] sm:$0xff]
        %v283 = vld [vmem:[%s263 + $0x60] sm:$0xff]
        %v284 = vld [vmem:[%s263 + $0x68] sm:$0xff]
        %v285 = vld [vmem:[%s263 + $0x70] sm:$0xff]
        %v286 = vld [vmem:[%s263 + $0x78] sm:$0xff]
        %v287 = vld [vmem:[%s268] sm:$0x1]
        %v289 = vlaneseq
        %v290 = vshrl.u32 %v289, 7
        %v291 = vsub.s32 0, %v290
        %v292 = vrot.slane %v287, %v291
        %294 = vmatprep.subr.mxu0 0.0
        %295 = vmatpush1.msra.mxu0 %v271
        %296 = vmatprep.subr.mxu0 0.0
        %297 = vmatpush1.msra.mxu0 %v272
        %298 = vmatprep.subr.mxu0 0.0
        %299 = vmatpush1.msra.mxu0 %v273
        %300 = vmatprep.subr.mxu0 0.0
        %301 = vmatpush1.msra.mxu0 %v274
        %302 = vmatprep.subr.mxu0 0.0
        %303 = vmatpush1.msra.mxu0 %v275
        %304 = vmatprep.subr.mxu0 0.0
        %305 = vmatpush1.msra.mxu0 %v276
        %306 = vmatprep.subr.mxu0 0.0
        %307 = vmatpush1.msra.mxu0 %v277
        %308 = vmatprep.subr.mxu0 0.0
        %309 = vmatpush1.msra.mxu0 %v278
        %310 = vmatprep.subr.mxu0 0.0
        %311 = vmatpush1.msra.mxu0 %v279
        %312 = vmatprep.subr.mxu0 0.0
        %313 = vmatpush1.msra.mxu0 %v280
        %314 = vmatprep.subr.mxu0 0.0
        %315 = vmatpush1.msra.mxu0 %v281
        %316 = vmatprep.subr.mxu0 0.0
        %317 = vmatpush1.msra.mxu0 %v282
        %318 = vmatprep.subr.mxu0 0.0
        %319 = vmatpush1.msra.mxu0 %v283
        %320 = vmatprep.subr.mxu0 0.0
        %321 = vmatpush1.msra.mxu0 %v284
        %322 = vmatprep.subr.mxu0 0.0
        %323 = vmatpush1.msra.mxu0 %v285
        %324 = vmatprep.subr.mxu0 0.0
        %325 = vmatpush1.msra.mxu0 %v286
        %326 = vmatprep.subr.mxu0 0.0
        %327 = vmatpush1.msra.mxu0 0.0
        %328 = vmatprep.subr.mxu0 0.0
        %329 = vmatpush1.msra.mxu0 0.0
        %330 = vmatprep.subr.mxu0 0.0
        %331 = vmatpush1.msra.mxu0 0.0
        %332 = vmatprep.subr.mxu0 0.0
        %333 = vmatpush1.msra.mxu0 0.0
        %334 = vmatprep.subr.mxu0 0.0
        %335 = vmatpush1.msra.mxu0 0.0
        %336 = vmatprep.subr.mxu0 0.0
        %337 = vmatpush1.msra.mxu0 0.0
        %338 = vmatprep.subr.mxu0 0.0
        %339 = vmatpush1.msra.mxu0 0.0
        %340 = vmatprep.subr.mxu0 0.0
        %341 = vmatpush1.msra.mxu0 0.0
        %342 = vmatprep.subr.mxu0 0.0
        %343 = vmatpush1.msra.mxu0 0.0
        %344 = vmatprep.subr.mxu0 0.0
        %345 = vmatpush1.msra.mxu0 0.0
        %346 = vmatprep.subr.mxu0 0.0
        %347 = vmatpush1.msra.mxu0 0.0
        %348 = vmatprep.subr.mxu0 0.0
        %349 = vmatpush1.msra.mxu0 0.0
        %350 = vmatprep.subr.mxu0 0.0
        %351 = vmatpush1.msra.mxu0 0.0
        %352 = vmatprep.subr.mxu0 0.0
        %353 = vmatpush1.msra.mxu0 0.0
        %354 = vmatprep.subr.mxu0 0.0
        %355 = vmatpush1.msra.mxu0 0.0
        %356 = vmatprep.subr.mxu0 0.0
        %357 = vmatpush1.msra.mxu0 0.0
        %358 = vmatprep.mubr.f32.mxu0 0.0
        %359 = vmatmul.mubr.f32.gmra.mrb[0].mxu0 %v270
        %v360 = vpop.f32.mrb[0].mxu0
        %v361 = vadd.f32 %v292, %v360
        %v362 = vpop.f32.mrb[0].mxu0
        %363 = vdwg.mxu0
        %v364 = vmax.f32 %v361, 0.0
        %v365 = vld [vmem:[%s4] sm:$0xff]
        %v366 = vld [vmem:[%s4 + $0x8] sm:$0xff]
        %v367 = vld [vmem:[%s4 + $0x10] sm:$0xff]
        %v368 = vld [vmem:[%s4 + $0x18] sm:$0xff]
        %v369 = vld [vmem:[%s4 + $0x20] sm:$0xff]
        %v370 = vld [vmem:[%s4 + $0x28] sm:$0xff]
        %v371 = vld [vmem:[%s4 + $0x30] sm:$0xff]
        %v372 = vld [vmem:[%s4 + $0x38] sm:$0xff]
        %v373 = vld [vmem:[%s4 + $0x40] sm:$0xff]
        %v374 = vld [vmem:[%s4 + $0x48] sm:$0xff]
        %v375 = vld [vmem:[%s4 + $0x50] sm:$0xff]
        %v376 = vld [vmem:[%s4 + $0x58] sm:$0xff]
        %v377 = vld [vmem:[%s4 + $0x60] sm:$0xff]
        %v378 = vld [vmem:[%s4 + $0x68] sm:$0xff]
        %v379 = vld [vmem:[%s4 + $0x70] sm:$0xff]
        %v380 = vld [vmem:[%s4 + $0x78] sm:$0xff]
        %v381 = vld [vmem:[%s5] sm:$0x1]
        %v383 = vlaneseq
        %v384 = vshrl.u32 %v383, 7
        %v385 = vsub.s32 0, %v384
        %v386 = vrot.slane %v381, %v385
        %388 = vmatprep.subr.mxu0 0.0
        %389 = vmatpush1.msra.mxu0 %v365
        %390 = vmatprep.subr.mxu0 0.0
        %391 = vmatpush1.msra.mxu0 %v366
        %392 = vmatprep.subr.mxu0 0.0
        %393 = vmatpush1.msra.mxu0 %v367
        %394 = vmatprep.subr.mxu0 0.0
        %395 = vmatpush1.msra.mxu0 %v368
        %396 = vmatprep.subr.mxu0 0.0
        %397 = vmatpush1.msra.mxu0 %v369
        %398 = vmatprep.subr.mxu0 0.0
        %399 = vmatpush1.msra.mxu0 %v370
        %400 = vmatprep.subr.mxu0 0.0
        %401 = vmatpush1.msra.mxu0 %v371
        %402 = vmatprep.subr.mxu0 0.0
        %403 = vmatpush1.msra.mxu0 %v372
        %404 = vmatprep.subr.mxu0 0.0
        %405 = vmatpush1.msra.mxu0 %v373
        %406 = vmatprep.subr.mxu0 0.0
        %407 = vmatpush1.msra.mxu0 %v374
        %408 = vmatprep.subr.mxu0 0.0
        %409 = vmatpush1.msra.mxu0 %v375
        %410 = vmatprep.subr.mxu0 0.0
        %411 = vmatpush1.msra.mxu0 %v376
        %412 = vmatprep.subr.mxu0 0.0
        %413 = vmatpush1.msra.mxu0 %v377
        %414 = vmatprep.subr.mxu0 0.0
        %415 = vmatpush1.msra.mxu0 %v378
        %416 = vmatprep.subr.mxu0 0.0
        %417 = vmatpush1.msra.mxu0 %v379
        %418 = vmatprep.subr.mxu0 0.0
        %419 = vmatpush1.msra.mxu0 %v380
        %420 = vmatprep.subr.mxu0 0.0
        %421 = vmatpush1.msra.mxu0 0.0
        %422 = vmatprep.subr.mxu0 0.0
        %423 = vmatpush1.msra.mxu0 0.0
        %424 = vmatprep.subr.mxu0 0.0
        %425 = vmatpush1.msra.mxu0 0.0
        %426 = vmatprep.subr.mxu0 0.0
        %427 = vmatpush1.msra.mxu0 0.0
        %428 = vmatprep.subr.mxu0 0.0
        %429 = vmatpush1.msra.mxu0 0.0
        %430 = vmatprep.subr.mxu0 0.0
        %431 = vmatpush1.msra.mxu0 0.0
        %432 = vmatprep.subr.mxu0 0.0
        %433 = vmatpush1.msra.mxu0 0.0
        %434 = vmatprep.subr.mxu0 0.0
        %435 = vmatpush1.msra.mxu0 0.0
        %436 = vmatprep.subr.mxu0 0.0
        %437 = vmatpush1.msra.mxu0 0.0
        %438 = vmatprep.subr.mxu0 0.0
        %439 = vmatpush1.msra.mxu0 0.0
        %440 = vmatprep.subr.mxu0 0.0
        %441 = vmatpush1.msra.mxu0 0.0
        %442 = vmatprep.subr.mxu0 0.0
        %443 = vmatpush1.msra.mxu0 0.0
        %444 = vmatprep.subr.mxu0 0.0
        %445 = vmatpush1.msra.mxu0 0.0
        %446 = vmatprep.subr.mxu0 0.0
        %447 = vmatpush1.msra.mxu0 0.0
        %448 = vmatprep.subr.mxu0 0.0
        %449 = vmatpush1.msra.mxu0 0.0
        %450 = vmatprep.subr.mxu0 0.0
        %451 = vmatpush1.msra.mxu0 0.0
        %452 = vmatprep.mubr.f32.mxu0 0.0
        %453 = vmatmul.mubr.f32.gmra.mrb[0].mxu0 %v364
        %v454 = vpop.f32.mrb[0].mxu0
        %v455 = vadd.f32 %v386, %v454
        %v456 = vpop.f32.mrb[0].mxu0
        %457 = vdwg.mxu0
        %458 = vst [vmem:[%s253] sm:$0xff] %v455
        %s459 = sand.u32 %s153, 1
        %s460 = scalar_lea.sflag [#allocation5], %s459
        %s461 = sand.u32 %s153, 1
        %s462 = smul.addr %s461, 8
        %s463 = scalar_lea.vmem [#allocation4], %s462
        // Predicated region
        $region41: #{_adapter_forward.1} parent=39 // pred_check
          %p464 = pneg %p163
        $region42: #{_adapter_forward.1} parent=39 // pred_check_branch
          %466 = sbr.rel (%p464) target = $region44
        $region43: #{_adapter_forward.1} parent=39 // pred_region
          %s468 = ssub.s32 128, 128
          %469 = vsyncadd %s460, %s468
          %s470 = smul.addr %s21, 128
          %s471 = scalar_lea.hbm %s6, %s470
          %s473 = sshll.u32 %s463, 4
          %s474 = int_to_ptr.vmem [resolvable:$true] %s473
          %476 = dma.vmem_to_hbm [thread:$0]  %s474, 128, %s471, %s460
        $region44: #{_adapter_forward.1} parent=39 // pred_fallthru
          _
      $region40: #{_adapter_forward.1} parent=5 // pred_fallthru
        _
      %p477 = scmp.le.s32.totalorder 2, %s16
      // Predicated region
      $region45: #{_adapter_forward.1} parent=5 // pred_check
        %p478 = pneg %p477
      $region46: #{_adapter_forward.1} parent=5 // pred_check_branch
        %480 = sbr.rel (%p478) target = $region48
      $region47: #{_adapter_forward.1} parent=5 // pred_region
        %s481 = ssub.s32 %s16, 2
        // Predicated region
        $region49: #{_adapter_forward.1} parent=47 // pred_check
          %p482 = pneg %p169
        $region50: #{_adapter_forward.1} parent=47 // pred_check_branch
          %484 = sbr.rel (%p482) target = $region52
        $region51: #{_adapter_forward.1} parent=47 // pred_region
          %s485 = sand.u32 %s154, 1
          %s486 = scalar_lea.sflag [#allocation5], %s485
          %s487 = sand.u32 %s154, 1
          %s488 = smul.addr %s487, 8
          %s489 = scalar_lea.vmem [#allocation4], %s488
          %490 = dma.done %s486, 128
        $region52: #{_adapter_forward.1} parent=47 // pred_fallthru
          _
      $region48: #{_adapter_forward.1} parent=5 // pred_fallthru
        _
    $region6: #{_adapter_forward.1} parent=1 // loop_footer
      %s20 = sadd.s32 1, %s16
    $region7: #{_adapter_forward.1} parent=1 // loop_footer_branch
      %15 = sbr.rel target = $region3
    $region8: #{_adapter_forward.1} parent=1 // loop_exit
      _
    %491 = vsyncpa [#allocation5], 1
    %s492 = scalar_lea.sflag [#allocation5], 1
    %493 = vsyncpa %s492, 1

</llo_original>
